<compile_context>
chip_gen: v7x
topology: tpu7x:2x2x1
jax: 0.10.0
libtpu: 0.0.40
codegen_flags: <defaults>
</compile_context>

<pallas_src>
import jax
import jax.numpy as jnp
from jax.experimental import pallas as pl
from jax.experimental.pallas import tpu as pltpu


_TILE_BYTES = 2 * 1024 * 1024  # per-tile byte budget (~2 MiB)


def _vmem_cap_bytes() -> int:
    """Generation-aware VMEM cap with headroom for Mosaic scratch/temporaries."""
    cap = 64 * 1024 * 1024  # conservative fallback (works on every generation)
    try:
        info = pltpu.get_tpu_info()
        phys = getattr(info, "vmem_capacity_bytes", None)
        if phys:
            cap = int(phys)
    except Exception:
        pass
    return (cap * 3) // 4  # ~48 MiB on v7x, ~96 MiB on v5e/v6e


def _transpose2d_kernel(x_ref, o_ref):
    # x_ref : (t_hw, t_c) tile of the (N, H*W, C) input view   (lane axis = C)
    # o_ref : (t_c, t_hw) tile of the (N, C, H*W) output       (lane axis = HW, dense)
    o_ref[...] = x_ref[...].T  # 2D lane<->sublane transpose on the XLU


def _transpose3d_kernel(x_ref, o_ref):
    # x_ref : (n_blk, t_hw, C) block  ->  o_ref : (n_blk, C, t_hw) block
    # TODO(synk): for sub-32-bit dtypes with very small C, packing channel
    # pairs/quads via pltpu.bitcast before the transpose would cut XLU work.
    o_ref[...] = jnp.swapaxes(x_ref[...], 1, 2)


def nhwc_to_nchw(x):
    """x: (N, H, W, C)  ->  (N, C, H, W), same dtype (pure layout transpose)."""
    N, H, W, C = x.shape
    HW = H * W
    itemsize = jnp.dtype(x.dtype).itemsize

    # Lane-dense 2D-per-image view of the input (metadata-only reshape).
    xf = x.reshape(N, HW, C)

    small_c = C * itemsize <= 128  # channels fit well under one vreg lane row

    if small_c:
        # --- batch-folded path: block = (n_blk, t_hw, C) -> (n_blk, C, t_hw) ---
        per_image = HW * C * itemsize
        if per_image <= _TILE_BYTES:
            t_hw = HW
            n_blk = max(1, min(N, _TILE_BYTES // max(per_image, 1)))
        else:
            n_blk = 1
            t_hw = max(128, (_TILE_BYTES // (C * itemsize)) // 128 * 128)
            t_hw = min(t_hw, HW)
        grid = (pl.cdiv(N, n_blk), pl.cdiv(HW, t_hw))
        in_specs = [pl.BlockSpec((n_blk, t_hw, C), lambda n, i: (n, i, 0))]
        out_specs = pl.BlockSpec((n_blk, C, t_hw), lambda n, i: (n, 0, i))
        kernel = _transpose3d_kernel
        tile_bytes = n_blk * t_hw * C * itemsize
    else:
        # --- batch-squeezed path: block = (t_hw, t_c) -> (t_c, t_hw) ---
        if 128 * C * itemsize <= _TILE_BYTES:
            t_c = C  # full-C tiles: one contiguous input burst per tile row block
        else:
            t_c = max(128, (_TILE_BYTES // (128 * itemsize)) // 128 * 128)
        t_hw_budget = max(128, (_TILE_BYTES // (t_c * itemsize)) // 128 * 128)
        t_hw = HW if HW <= t_hw_budget else t_hw_budget
        # HW-tile axis innermost: consecutive steps stream contiguous HBM input.
        grid = (N, pl.cdiv(C, t_c), pl.cdiv(HW, t_hw))
        in_specs = [pl.BlockSpec((None, t_hw, t_c), lambda n, j, i: (n, i, j))]
        out_specs = pl.BlockSpec((None, t_c, t_hw), lambda n, j, i: (n, j, i))
        kernel = _transpose2d_kernel
        tile_bytes = t_hw * t_c * itemsize

    # Double-buffered in + out tiles plus transpose temporary, with margin,
    # capped by the generation-aware VMEM budget.
    vmem_limit = int(min(_vmem_cap_bytes(), max(32 * 1024 * 1024, 10 * tile_bytes)))

    yf = pl.pallas_call(
        kernel,
        out_shape=jax.ShapeDtypeStruct((N, C, HW), x.dtype),
        grid_spec=pltpu.PrefetchScalarGridSpec(
            num_scalar_prefetch=0,
            grid=grid,
            in_specs=in_specs,
            out_specs=out_specs,
        ),
        compiler_params=pltpu.CompilerParams(
            dimension_semantics=("parallel",) * len(grid),
            vmem_limit_bytes=vmem_limit,
        ),
        cost_estimate=pl.CostEstimate(
            flops=0,
            transcendentals=0,
            bytes_accessed=2 * x.size * itemsize,
        ),
    )(xf)

    # Metadata-only reshape back to NCHW.
    return yf.reshape(N, C, H, W)


if __name__ == "__main__":
    # TODO(synk): backward (cudnnNchwToNhwc) not implemented; forward only.
    key = jax.random.PRNGKey(0)

    # Small NHWC input consistent with the module: batch=2, 16x16 spatial, C=4.
    N, H, W, C = 2, 16, 16, 4
    x = jax.random.normal(key, (N, H, W, C), dtype=jnp.float32)

    y = nhwc_to_nchw(x)
    jax.block_until_ready(y)

    y_ref = jnp.transpose(x, (0, 3, 1, 2))
    assert y.shape == (N, C, H, W)
    assert y.dtype == x.dtype
    assert bool(jnp.array_equal(y, y_ref))

    # Small-C path with odd (non-8/128-divisible) spatial dims.
    x2 = jax.random.normal(jax.random.PRNGKey(1), (2, 15, 15, 3), dtype=jnp.float32)
    y2 = nhwc_to_nchw(x2)
    jax.block_until_ready(y2)
    assert bool(jnp.array_equal(y2, jnp.transpose(x2, (0, 3, 1, 2))))

    # Medium-C path with a ragged HW tiling (HW=5184 > one 2 MiB tile at C=128).
    x3 = jax.random.normal(jax.random.PRNGKey(2), (1, 72, 72, 128), dtype=jnp.float32)
    y3 = nhwc_to_nchw(x3)
    jax.block_until_ready(y3)
    assert bool(jnp.array_equal(y3, jnp.transpose(x3, (0, 3, 1, 2))))

    # bf16 small-C path.
    x4 = jax.random.normal(jax.random.PRNGKey(3), (2, 16, 16, 8), dtype=jnp.bfloat16)
    y4 = nhwc_to_nchw(x4)
    jax.block_until_ready(y4)
    assert bool(jnp.array_equal(y4, jnp.transpose(x4, (0, 3, 1, 2))))

    print("KERNEL_OK")
</pallas_src>

<mosaic_0001>
module attributes {stable_mosaic.version = 11 : i64} {
  func.func @_transpose3d_kernel(%arg0: i32, %arg1: i32, %arg2: memref<2x256x4xf32, #tpu.memory_space<vmem>>, %arg3: memref<2x4x256xf32, #tpu.memory_space<vmem>>) attributes {dimension_semantics = [#tpu.dimension_semantics<parallel>, #tpu.dimension_semantics<parallel>], iteration_bounds = array<i64: 1, 1>, scalar_prefetch = 0 : i64, scratch_operands = 0 : i64, tpu.core_type = #tpu.core_type<tc>, window_params = [{transform_indices = @transform_0, window_bounds = array<i64: 2, 256, 4>}, {transform_indices = @transform_1, window_bounds = array<i64: 2, 4, 256>}]} {
    %c0 = arith.constant 0 : index
    %c0_0 = arith.constant 0 : index
    %c0_1 = arith.constant 0 : index
    %0 = vector.load %arg2[%c0, %c0_0, %c0_1] : memref<2x256x4xf32, #tpu.memory_space<vmem>>, vector<2x256x4xf32>
    %1 = tpu.transpose %0, [0, 2, 1] : vector<2x256x4xf32> -> vector<2x4x256xf32>
    %c0_2 = arith.constant 0 : index
    %c0_3 = arith.constant 0 : index
    %c0_4 = arith.constant 0 : index
    %2 = vector.load %arg3[%c0_2, %c0_3, %c0_4] : memref<2x4x256xf32, #tpu.memory_space<vmem>>, vector<2x4x256xf32>
    tpu.vector_store %arg3[%c0_2, %c0_3, %c0_4], %1 {strides = array<i32>} : memref<2x4x256xf32, #tpu.memory_space<vmem>>, vector<2x4x256xf32>,
    return
  }
  func.func @transform_0(%arg0: i32, %arg1: i32) -> (i32, i32, i32) {
    %c0_i32 = arith.constant 0 : i32
    %c0_i32_0 = arith.constant 0 : i32
    return %arg0, %arg1, %c0_i32 : i32, i32, i32
  }
  func.func @transform_1(%arg0: i32, %arg1: i32) -> (i32, i32, i32) {
    %c0_i32 = arith.constant 0 : i32
    %c0_i32_0 = arith.constant 0 : i32
    return %arg0, %c0_i32, %arg1 : i32, i32, i32
  }
}

</mosaic_0001>

<llo_original>
// kernel: tpu_custom_call.1
$region0: #{tpu_custom_call.1}
  #allocation0 [shape = 'u32[]', space=smem, size = 0x4, offset = 0x4, fixed_abs, tag = 'smem constant byte address 0x4 - core index']
  #allocation1 [shape = 'u32[144,128]{1,0:T(1,128)}', space=vmem, size = 0x12000, scoped, tag = 'internal scratch']
  %s0 = inlined_call_operand.vmem [shape: f32[2,256,4], index: 0, kind: input, shape index: {}]
  %s1 = inlined_call_operand.hbm [shape: f32[2,4,256], index: 1, kind: output, shape index: {}]
  %s2 = sld [smem:[#allocation0]]
  $region14: #{tpu_custom_call.1} parent=0
    _
  %s4 = ssub.s32 1, %s2
  %s5 = scalar_select 0, %s4, %s2
  $region1: #{tpu_custom_call.1} parent=0
    #allocation2 [shape = 'u8[8192]{0}', space=vmem, size = 0x2000, scoped, tag = 'output window, operand 0, single buffered']
    #allocation3 [shape = 's32[1]{0}', space=sflag, size = 0x4, scoped, tag = 'scoped memory for tpu_custom_call.1']
    %6 = vsyncpa [#allocation3], 0
    // Predicated region
    $region2: #{tpu_custom_call.1} parent=1 // pred_check
      _
    $region3: #{tpu_custom_call.1} parent=1 // pred_check_branch
      %8 = sbr.rel (0) target = $region5
    $region4: #{tpu_custom_call.1} parent=1 // pred_region
      _
    $region5: #{tpu_custom_call.1} parent=1 // pred_fallthru
      _
    %v9 = vld [vmem:[%s0] sm:$0xff]
    %v10 = vld [vmem:[%s0 + $0x8] sm:$0xff]
    %v11 = vld [vmem:[%s0 + $0x10] sm:$0xff]
    %v12 = vld [vmem:[%s0 + $0x18] sm:$0xff]
    %v13 = vld [vmem:[%s0 + $0x20] sm:$0xff]
    %v14 = vld [vmem:[%s0 + $0x28] sm:$0xff]
    %v15 = vld [vmem:[%s0 + $0x30] sm:$0xff]
    %v16 = vld [vmem:[%s0 + $0x38] sm:$0xff]
    %v17 = vld [vmem:[%s0 + $0x40] sm:$0xff]
    %v18 = vld [vmem:[%s0 + $0x48] sm:$0xff]
    %v19 = vld [vmem:[%s0 + $0x50] sm:$0xff]
    %v20 = vld [vmem:[%s0 + $0x58] sm:$0xff]
    %v21 = vld [vmem:[%s0 + $0x60] sm:$0xff]
    %v22 = vld [vmem:[%s0 + $0x68] sm:$0xff]
    %v23 = vld [vmem:[%s0 + $0x70] sm:$0xff]
    %v24 = vld [vmem:[%s0 + $0x78] sm:$0xff]
    %v25 = vld [vmem:[%s0 + $0x80] sm:$0xff]
    %v26 = vld [vmem:[%s0 + $0x88] sm:$0xff]
    %v27 = vld [vmem:[%s0 + $0x90] sm:$0xff]
    %v28 = vld [vmem:[%s0 + $0x98] sm:$0xff]
    %v29 = vld [vmem:[%s0 + $0xa0] sm:$0xff]
    %v30 = vld [vmem:[%s0 + $0xa8] sm:$0xff]
    %v31 = vld [vmem:[%s0 + $0xb0] sm:$0xff]
    %v32 = vld [vmem:[%s0 + $0xb8] sm:$0xff]
    %v33 = vld [vmem:[%s0 + $0xc0] sm:$0xff]
    %v34 = vld [vmem:[%s0 + $0xc8] sm:$0xff]
    %v35 = vld [vmem:[%s0 + $0xd0] sm:$0xff]
    %v36 = vld [vmem:[%s0 + $0xd8] sm:$0xff]
    %v37 = vld [vmem:[%s0 + $0xe0] sm:$0xff]
    %v38 = vld [vmem:[%s0 + $0xe8] sm:$0xff]
    %v39 = vld [vmem:[%s0 + $0xf0] sm:$0xff]
    %v40 = vld [vmem:[%s0 + $0xf8] sm:$0xff]
    %v41 = vld [vmem:[%s0 + $0x100] sm:$0xff]
    %v42 = vld [vmem:[%s0 + $0x108] sm:$0xff]
    %v43 = vld [vmem:[%s0 + $0x110] sm:$0xff]
    %v44 = vld [vmem:[%s0 + $0x118] sm:$0xff]
    %v45 = vld [vmem:[%s0 + $0x120] sm:$0xff]
    %v46 = vld [vmem:[%s0 + $0x128] sm:$0xff]
    %v47 = vld [vmem:[%s0 + $0x130] sm:$0xff]
    %v48 = vld [vmem:[%s0 + $0x138] sm:$0xff]
    %v49 = vld [vmem:[%s0 + $0x140] sm:$0xff]
    %v50 = vld [vmem:[%s0 + $0x148] sm:$0xff]
    %v51 = vld [vmem:[%s0 + $0x150] sm:$0xff]
    %v52 = vld [vmem:[%s0 + $0x158] sm:$0xff]
    %v53 = vld [vmem:[%s0 + $0x160] sm:$0xff]
    %v54 = vld [vmem:[%s0 + $0x168] sm:$0xff]
    %v55 = vld [vmem:[%s0 + $0x170] sm:$0xff]
    %v56 = vld [vmem:[%s0 + $0x178] sm:$0xff]
    %v57 = vld [vmem:[%s0 + $0x180] sm:$0xff]
    %v58 = vld [vmem:[%s0 + $0x188] sm:$0xff]
    %v59 = vld [vmem:[%s0 + $0x190] sm:$0xff]
    %v60 = vld [vmem:[%s0 + $0x198] sm:$0xff]
    %v61 = vld [vmem:[%s0 + $0x1a0] sm:$0xff]
    %v62 = vld [vmem:[%s0 + $0x1a8] sm:$0xff]
    %v63 = vld [vmem:[%s0 + $0x1b0] sm:$0xff]
    %v64 = vld [vmem:[%s0 + $0x1b8] sm:$0xff]
    %v65 = vld [vmem:[%s0 + $0x1c0] sm:$0xff]
    %v66 = vld [vmem:[%s0 + $0x1c8] sm:$0xff]
    %v67 = vld [vmem:[%s0 + $0x1d0] sm:$0xff]
    %v68 = vld [vmem:[%s0 + $0x1d8] sm:$0xff]
    %v69 = vld [vmem:[%s0 + $0x1e0] sm:$0xff]
    %v70 = vld [vmem:[%s0 + $0x1e8] sm:$0xff]
    %v71 = vld [vmem:[%s0 + $0x1f0] sm:$0xff]
    %v72 = vld [vmem:[%s0 + $0x1f8] sm:$0xff]
    %73 = vxpose.xlu0.b32.start [1/16] %v9, 128
    %74 = vxpose.xlu0.b32.cont [2/16] %v10, 128
    %75 = vxpose.xlu0.b32.cont [3/16] %v11, 128
    %76 = vxpose.xlu0.b32.cont [4/16] %v12, 128
    %77 = vxpose.xlu0.b32.cont [5/16] %v13, 128
    %78 = vxpose.xlu0.b32.cont [6/16] %v14, 128
    %79 = vxpose.xlu0.b32.cont [7/16] %v15, 128
    %80 = vxpose.xlu0.b32.cont [8/16] %v16, 128
    %81 = vxpose.xlu0.b32.cont [9/16] %v17, 128
    %82 = vxpose.xlu0.b32.cont [10/16] %v18, 128
    %83 = vxpose.xlu0.b32.cont [11/16] %v19, 128
    %84 = vxpose.xlu0.b32.cont [12/16] %v20, 128
    %85 = vxpose.xlu0.b32.cont [13/16] %v21, 128
    %86 = vxpose.xlu0.b32.cont [14/16] %v22, 128
    %87 = vxpose.xlu0.b32.cont [15/16] %v23, 128
    %88 = vxpose.xlu0.b32.end [16/16] %v24, 128
    %v89 = vpop.trf.xlu0
    %v90 = vpop.trf.xlu0
    %v91 = vpop.trf.xlu0
    %v92 = vpop.trf.xlu0
    %v93 = vpop.trf.xlu0
    %v94 = vpop.trf.xlu0
    %v95 = vpop.trf.xlu0
    %v96 = vpop.trf.xlu0
    %v97 = vpop.trf.xlu0
    %v98 = vpop.trf.xlu0
    %v99 = vpop.trf.xlu0
    %v100 = vpop.trf.xlu0
    %v101 = vpop.trf.xlu0
    %v102 = vpop.trf.xlu0
    %v103 = vpop.trf.xlu0
    %v104 = vpop.trf.xlu0
    %105 = vxpose.xlu0.b32.start [1/16] %v25, 128
    %106 = vxpose.xlu0.b32.cont [2/16] %v26, 128
    %107 = vxpose.xlu0.b32.cont [3/16] %v27, 128
    %108 = vxpose.xlu0.b32.cont [4/16] %v28, 128
    %109 = vxpose.xlu0.b32.cont [5/16] %v29, 128
    %110 = vxpose.xlu0.b32.cont [6/16] %v30, 128
    %111 = vxpose.xlu0.b32.cont [7/16] %v31, 128
    %112 = vxpose.xlu0.b32.cont [8/16] %v32, 128
    %113 = vxpose.xlu0.b32.cont [9/16] %v33, 128
    %114 = vxpose.xlu0.b32.cont [10/16] %v34, 128
    %115 = vxpose.xlu0.b32.cont [11/16] %v35, 128
    %116 = vxpose.xlu0.b32.cont [12/16] %v36, 128
    %117 = vxpose.xlu0.b32.cont [13/16] %v37, 128
    %118 = vxpose.xlu0.b32.cont [14/16] %v38, 128
    %119 = vxpose.xlu0.b32.cont [15/16] %v39, 128
    %120 = vxpose.xlu0.b32.end [16/16] %v40, 128
    %v121 = vpop.trf.xlu0
    %v122 = vpop.trf.xlu0
    %v123 = vpop.trf.xlu0
    %v124 = vpop.trf.xlu0
    %v125 = vpop.trf.xlu0
    %v126 = vpop.trf.xlu0
    %v127 = vpop.trf.xlu0
    %v128 = vpop.trf.xlu0
    %v129 = vpop.trf.xlu0
    %v130 = vpop.trf.xlu0
    %v131 = vpop.trf.xlu0
    %v132 = vpop.trf.xlu0
    %v133 = vpop.trf.xlu0
    %v134 = vpop.trf.xlu0
    %v135 = vpop.trf.xlu0
    %v136 = vpop.trf.xlu0
    %137 = vxpose.xlu0.b32.start [1/16] %v41, 128
    %138 = vxpose.xlu0.b32.cont [2/16] %v42, 128
    %139 = vxpose.xlu0.b32.cont [3/16] %v43, 128
    %140 = vxpose.xlu0.b32.cont [4/16] %v44, 128
    %141 = vxpose.xlu0.b32.cont [5/16] %v45, 128
    %142 = vxpose.xlu0.b32.cont [6/16] %v46, 128
    %143 = vxpose.xlu0.b32.cont [7/16] %v47, 128
    %144 = vxpose.xlu0.b32.cont [8/16] %v48, 128
    %145 = vxpose.xlu0.b32.cont [9/16] %v49, 128
    %146 = vxpose.xlu0.b32.cont [10/16] %v50, 128
    %147 = vxpose.xlu0.b32.cont [11/16] %v51, 128
    %148 = vxpose.xlu0.b32.cont [12/16] %v52, 128
    %149 = vxpose.xlu0.b32.cont [13/16] %v53, 128
    %150 = vxpose.xlu0.b32.cont [14/16] %v54, 128
    %151 = vxpose.xlu0.b32.cont [15/16] %v55, 128
    %152 = vxpose.xlu0.b32.end [16/16] %v56, 128
    %v153 = vpop.trf.xlu0
    %v154 = vpop.trf.xlu0
    %v155 = vpop.trf.xlu0
    %v156 = vpop.trf.xlu0
    %v157 = vpop.trf.xlu0
    %v158 = vpop.trf.xlu0
    %v159 = vpop.trf.xlu0
    %v160 = vpop.trf.xlu0
    %v161 = vpop.trf.xlu0
    %v162 = vpop.trf.xlu0
    %v163 = vpop.trf.xlu0
    %v164 = vpop.trf.xlu0
    %v165 = vpop.trf.xlu0
    %v166 = vpop.trf.xlu0
    %v167 = vpop.trf.xlu0
    %v168 = vpop.trf.xlu0
    %169 = vxpose.xlu0.b32.start [1/16] %v57, 128
    %170 = vxpose.xlu0.b32.cont [2/16] %v58, 128
    %171 = vxpose.xlu0.b32.cont [3/16] %v59, 128
    %172 = vxpose.xlu0.b32.cont [4/16] %v60, 128
    %173 = vxpose.xlu0.b32.cont [5/16] %v61, 128
    %174 = vxpose.xlu0.b32.cont [6/16] %v62, 128
    %175 = vxpose.xlu0.b32.cont [7/16] %v63, 128
    %176 = vxpose.xlu0.b32.cont [8/16] %v64, 128
    %177 = vxpose.xlu0.b32.cont [9/16] %v65, 128
    %178 = vxpose.xlu0.b32.cont [10/16] %v66, 128
    %179 = vxpose.xlu0.b32.cont [11/16] %v67, 128
    %180 = vxpose.xlu0.b32.cont [12/16] %v68, 128
    %181 = vxpose.xlu0.b32.cont [13/16] %v69, 128
    %182 = vxpose.xlu0.b32.cont [14/16] %v70, 128
    %183 = vxpose.xlu0.b32.cont [15/16] %v71, 128
    %184 = vxpose.xlu0.b32.end [16/16] %v72, 128
    %v185 = vpop.trf.xlu0
    %v186 = vpop.trf.xlu0
    %v187 = vpop.trf.xlu0
    %v188 = vpop.trf.xlu0
    %v189 = vpop.trf.xlu0
    %v190 = vpop.trf.xlu0
    %v191 = vpop.trf.xlu0
    %v192 = vpop.trf.xlu0
    %v193 = vpop.trf.xlu0
    %v194 = vpop.trf.xlu0
    %v195 = vpop.trf.xlu0
    %v196 = vpop.trf.xlu0
    %v197 = vpop.trf.xlu0
    %v198 = vpop.trf.xlu0
    %v199 = vpop.trf.xlu0
    %v200 = vpop.trf.xlu0
    %v205 = vcombine.low %v89, %v121
    %v206 = vcombine.low %v153, %v185
    %209 = vst [vmem:[#allocation2] sm:$0xff] %v205
    %210 = vst [vmem:[#allocation2 + $0x8] sm:$0xff] %v206
    // Predicated region
    $region6: #{tpu_custom_call.1} parent=1 // pred_check
      _
    $region7: #{tpu_custom_call.1} parent=1 // pred_check_branch
      %212 = sbr.rel (0) target = $region9
    $region8: #{tpu_custom_call.1} parent=1 // pred_region
      %s214 = ssub.s32 256, 256
      %215 = vsyncadd [#allocation3], %s214
      %s216 = sshll.u32 [#allocation2], 4
      %s217 = int_to_ptr.vmem [resolvable:$true] %s216
      %222 = dma.vmem_to_hbm [thread:$0]  %s217, 256, %s1, [#allocation3], 128, 128, 8
    $region9: #{tpu_custom_call.1} parent=1 // pred_fallthru
      _
    // Predicated region
    $region10: #{tpu_custom_call.1} parent=1 // pred_check
      _
    $region11: #{tpu_custom_call.1} parent=1 // pred_check_branch
      %224 = sbr.rel (0) target = $region13
    $region12: #{tpu_custom_call.1} parent=1 // pred_region
      %225 = dma.done [#allocation3], 256
    $region13: #{tpu_custom_call.1} parent=1 // pred_fallthru
      _
    %226 = vsyncpa [#allocation3], 1

</llo_original>
